<compile_context>
chip_gen: v7x
topology: tpu7x:2x2x1
jax: 0.10.0
libtpu: 0.0.40
codegen_flags: <defaults>
</compile_context>

<pallas_src>
import jax
import jax.numpy as jnp
import numpy as np
from jax.experimental import pallas as pl
from jax.experimental.pallas import tpu as pltpu


def _embedding_kernel(ids_ref, wemb_ref, pemb_ref, out_ref):
    """One grid step writes a (Tr, D) = (Tb*S, D) slab of flattened rows.

    ids_ref  : VMEM (Tr, 1) int32 token ids for the rows of this tile.
    wemb_ref : VMEM (V, D)  word-embedding table (full residency, V small).
    pemb_ref : VMEM (S, D)  position-embedding rows 0..S-1 (grid-invariant).
    out_ref  : VMEM (Tr, D) output slab (lane-dense, full-vreg stores).
    """
    tr, d = out_ref.shape
    v = wemb_ref.shape[0]
    s = pemb_ref.shape[0]

    # Clamp out-of-range ids (PyTorch raises; TPU has no runtime OOB check).
    ids = jnp.clip(ids_ref[...], 0, v - 1)                       # (Tr, 1)

    # One-hot gather on the MXU: (Tr, V) @ (V, D) -> (Tr, D).  MXU/vex slots
    # are otherwise idle here, and this yields a full-tile result so the store
    # path is unmasked full-vreg vst's.
    vocab_iota = jax.lax.broadcasted_iota(jnp.int32, (tr, v), 1)
    onehot = (ids == vocab_iota).astype(jnp.float32)             # (Tr, V)
    word = jnp.dot(onehot, wemb_ref[...],
                   preferred_element_type=jnp.float32)           # (Tr, D)

    # Fused position add.  Tile row 0 is a multiple of S, so positions within
    # the tile are arange(S) repeated Tr//S times: a free reshape plus a
    # broadcast add of the resident (S, D) slice — no gather, no second pass.
    out = word.reshape(tr // s, s, d) + pemb_ref[...][None, :, :]
    out_ref[...] = out.reshape(tr, d).astype(out_ref.dtype)

    # dropout == identity (eval mode)


def _pick_block_batches(batch, seq, target_rows=512):
    """Pick Tb (whole batch rows per grid step).

    Constraints / goals:
      * (Tb*S, D) output block obeys the (8,128) rule (Tb*S % 8 == 0 or full),
      * ~target_rows rows per tile to amortize the ~0.35 us per-step overhead,
      * keep >= 2 grid steps when the tiles stay reasonably sized, so v7x's
        two TensorCores both get work (v5e/v6e are indifferent).
    """
    valid = [tb for tb in range(1, batch + 1)
             if batch % tb == 0
             and ((tb * seq) % 8 == 0 or tb * seq == batch * seq)]
    tb = max([t for t in valid if t * seq <= target_rows], default=valid[-1])
    if batch // tb < 2:
        halved = [t for t in valid
                  if batch // t >= 2 and t * seq >= min(256, (batch * seq) // 2)]
        if halved:
            tb = max(halved)
    return tb


def embedding_layer_forward(x, word_emb, pos_emb, *, out_dtype=jnp.float32):
    """x: (B, S) int token ids; word_emb: (V, D); pos_emb: (L, D) -> (B, S, D)."""
    B, S = x.shape
    V, D = word_emb.shape
    L = pos_emb.shape[0]
    assert S <= L, "sequence length must not exceed max_length"
    assert S % 8 == 0 or S == L, \
        "position block needs S % 8 == 0 (or S == max_length) for the (8,128) rule"

    Tb = _pick_block_batches(B, S)
    Tr = Tb * S
    grid = (B // Tb,)

    # Flatten ids to (B*S, 1): avoids 2-D SMEM padding blowups and gives a
    # simple (Tr, 1) VMEM block per tile (last dim == full dim -> no 128 rule).
    ids_flat = x.reshape(B * S, 1).astype(jnp.int32)

    out_flat = pl.pallas_call(
        _embedding_kernel,
        out_shape=jax.ShapeDtypeStruct((B * S, D), out_dtype),
        grid=grid,
        in_specs=[
            pl.BlockSpec((Tr, 1), lambda t: (t, 0)),   # token ids for this tile
            pl.BlockSpec((V, D), lambda t: (0, 0)),    # word table (grid-invariant)
            pl.BlockSpec((S, D), lambda t: (0, 0)),    # pos rows 0..S-1 (grid-invariant)
        ],
        out_specs=pl.BlockSpec((Tr, D), lambda t: (t, 0)),
        compiler_params=pltpu.CompilerParams(
            # Independent row tiles -> megacore-shardable on v7x.
            dimension_semantics=("parallel",),
            # Real raise on v5e (16 MiB scoped default); plenty of headroom for
            # the small resident tables + double-buffered (Tr, D) tiles.
            vmem_limit_bytes=32 * 1024 * 1024,
        ),
    )(ids_flat, word_emb, pos_emb)

    return out_flat.reshape(B, S, D)


if __name__ == "__main__":
    # Module hyper-params (small, consistent with the PyTorch __init__).
    vocab_size = 32
    embedding_dim = 128
    padding_idx = 0
    max_length = 16

    # Input: (batch=2, seq=8) token ids.
    B, S = 2, 8

    key = jax.random.PRNGKey(0)
    k_ids, k_w, k_p = jax.random.split(key, 3)

    x = jax.random.randint(k_ids, (B, S), minval=0, maxval=vocab_size, dtype=jnp.int32)

    # Deterministic parameter init (nn.Embedding ~ N(0,1); padding_idx row zeroed).
    # Tables are rounded to bf16-representable f32 values so the one-hot MXU
    # gather is bitwise-exact regardless of the f32 matmul pass decomposition
    # (pass precision=jax.lax.Precision.HIGHEST to jnp.dot if full-f32 tables
    # must be gathered exactly).
    word_emb = jax.random.normal(k_w, (vocab_size, embedding_dim), dtype=jnp.float32)
    word_emb = word_emb.astype(jnp.bfloat16).astype(jnp.float32)
    word_emb = word_emb.at[padding_idx].set(0.0)
    pos_emb = jax.random.normal(k_p, (max_length, embedding_dim), dtype=jnp.float32)
    pos_emb = pos_emb.astype(jnp.bfloat16).astype(jnp.float32)

    out = jax.block_until_ready(embedding_layer_forward(x, word_emb, pos_emb))

    # Pure-JAX reference check (gather + position add, eval-mode dropout).
    ref = word_emb[x] + pos_emb[jnp.arange(S)][None, :, :]
    np.testing.assert_allclose(np.asarray(out), np.asarray(ref), rtol=1e-6, atol=1e-6)

    print("KERNEL_OK")
</pallas_src>

<mosaic_0001>
module attributes {stable_mosaic.version = 11 : i64} {
  func.func @_embedding_kernel(%arg0: i32, %arg1: memref<8x1xi32, #tpu.memory_space<vmem>>, %arg2: memref<32x128xf32, #tpu.memory_space<vmem>>, %arg3: memref<8x128xf32, #tpu.memory_space<vmem>>, %arg4: memref<8x128xf32, #tpu.memory_space<vmem>>) attributes {dimension_semantics = [#tpu.dimension_semantics<parallel>], iteration_bounds = array<i64: 2>, scalar_prefetch = 0 : i64, scratch_operands = 0 : i64, tpu.core_type = #tpu.core_type<tc>, window_params = [{transform_indices = @transform_0, window_bounds = array<i64: 8, 1>}, {pipeline_mode = #tpu.pipeline_mode<synchronous>, transform_indices = @transform_1, window_bounds = array<i64: 32, 128>}, {transform_indices = @transform_2, window_bounds = array<i64: 8, 128>}, {transform_indices = @transform_3, window_bounds = array<i64: 8, 128>}]} {
    %c0 = arith.constant 0 : index
    %c0_0 = arith.constant 0 : index
    %0 = vector.load %arg1[%c0, %c0_0] : memref<8x1xi32, #tpu.memory_space<vmem>>, vector<8x1xi32>
    %c0_i32 = arith.constant 0 : i32
    %c31_i32 = arith.constant 31 : i32
    %1 = vector.broadcast %c0_i32 : i32 to vector<8x1xi32>
    %2 = arith.maxsi %1, %0 : vector<8x1xi32>
    %3 = vector.broadcast %c31_i32 : i32 to vector<8x1xi32>
    %4 = arith.minsi %3, %2 : vector<8x1xi32>
    %5 = tpu.iota {dimensions = array<i32: 1>} : vector<8x32xi32>
    %6 = vector.broadcast %4 : vector<8x1xi32> to vector<8x32xi32>
    %7 = arith.cmpi eq, %6, %5 : vector<8x32xi32>
    %8 = arith.extui %7 : vector<8x32xi1> to vector<8x32xi32>
    %9 = arith.sitofp %8 : vector<8x32xi32> to vector<8x32xf32>
    %c0_1 = arith.constant 0 : index
    %c0_2 = arith.constant 0 : index
    %10 = vector.load %arg2[%c0_1, %c0_2] : memref<32x128xf32, #tpu.memory_space<vmem>>, vector<32x128xf32>
    %cst = arith.constant dense<0.000000e+00> : vector<8x128xf32>
    %11 = tpu.matmul %9, %10, %cst {dimension_numbers = #tpu.dot_dimension_numbers<[1], [0], [0], [1], [0, 0, 1, 1], [], []>} : vector<8x32xf32>, vector<32x128xf32>, vector<8x128xf32> -> vector<8x128xf32>
    %12 = vector.shape_cast %11 : vector<8x128xf32> to vector<1x8x128xf32>
    %c0_3 = arith.constant 0 : index
    %c0_4 = arith.constant 0 : index
    %13 = vector.load %arg3[%c0_3, %c0_4] : memref<8x128xf32, #tpu.memory_space<vmem>>, vector<8x128xf32>
    %14 = vector.shape_cast %13 : vector<8x128xf32> to vector<1x8x128xf32>
    %15 = arith.addf %12, %14 : vector<1x8x128xf32>
    %16 = vector.shape_cast %15 : vector<1x8x128xf32> to vector<8x128xf32>
    %c0_5 = arith.constant 0 : index
    %c0_6 = arith.constant 0 : index
    %17 = vector.load %arg4[%c0_5, %c0_6] : memref<8x128xf32, #tpu.memory_space<vmem>>, vector<8x128xf32>
    tpu.vector_store %arg4[%c0_5, %c0_6], %16 {strides = array<i32>} : memref<8x128xf32, #tpu.memory_space<vmem>>, vector<8x128xf32>,
    return
  }
  func.func @transform_0(%arg0: i32) -> (i32, i32) {
    %c0_i32 = arith.constant 0 : i32
    %c0_i32_0 = arith.constant 0 : i32
    return %arg0, %c0_i32 : i32, i32
  }
  func.func @transform_1(%arg0: i32) -> (i32, i32) {
    %c0_i32 = arith.constant 0 : i32
    %c0_i32_0 = arith.constant 0 : i32
    %c0_i32_1 = arith.constant 0 : i32
    return %c0_i32, %c0_i32_0 : i32, i32
  }
  func.func @transform_2(%arg0: i32) -> (i32, i32) {
    %c0_i32 = arith.constant 0 : i32
    %c0_i32_0 = arith.constant 0 : i32
    %c0_i32_1 = arith.constant 0 : i32
    return %c0_i32, %c0_i32_0 : i32, i32
  }
  func.func @transform_3(%arg0: i32) -> (i32, i32) {
    %c0_i32 = arith.constant 0 : i32
    %c0_i32_0 = arith.constant 0 : i32
    return %arg0, %c0_i32 : i32, i32
  }
}

</mosaic_0001>

<llo_original>
// kernel: tpu_custom_call.1
$region0: #{tpu_custom_call.1}
  #allocation0 [shape = 'u32[]', space=smem, size = 0x4, offset = 0x4, fixed_abs, tag = 'smem constant byte address 0x4 - core index']
  #allocation1 [shape = 'u32[144,128]{1,0:T(1,128)}', space=vmem, size = 0x12000, scoped, tag = 'internal scratch']
  %s0 = inlined_call_operand.vmem [shape: s32[16,1], index: 0, kind: input, shape index: {}]
  %s1 = inlined_call_operand.hbm [shape: f32[32,128], index: 1, kind: input, shape index: {}]
  %s2 = inlined_call_operand.vmem [shape: f32[16,128], index: 2, kind: input, shape index: {}]
  %s3 = inlined_call_operand.hbm [shape: f32[16,128], index: 3, kind: output, shape index: {}]
  %s4 = sld [smem:[#allocation0]]
  $region49: #{tpu_custom_call.1} parent=0
    _
  %s6 = ssub.s32 1, %s4
  %s7 = scalar_select 0, %s6, %s4
  $region1: #{tpu_custom_call.1} parent=0
    #allocation2 [shape = 'u8[16384]{0}', space=vmem, size = 0x4000, scoped, tag = 'input window, operand 1, single buffered']
    #allocation3 [shape = 's32[2]{0}', space=sflag, size = 0x8, scoped, tag = 'scoped memory for tpu_custom_call.1']
    #allocation4 [shape = 's32[2]{0}', space=sflag, size = 0x8, scoped, tag = 'scoped memory for tpu_custom_call.1']
    #allocation5 [shape = 'u8[8192]{0}', space=vmem, size = 0x2000, scoped, tag = 'output window, operand 0']
    %8 = vsyncpa [#allocation3], 0
    %9 = vsyncpa [#allocation4], 0
    %s10 = scalar_lea.sflag [#allocation4], 1
    %11 = vsyncpa %s10, 0
    loop: start=0, step=1, limit=4
    $region2: #{tpu_custom_call.1} parent=1 // loop_pre_header
      _
    $region3: #{tpu_custom_call.1} parent=1 // loop_header
      %s13 = sphi 0, %s17
      %p14 = scmp.ge.s32.totalorder %s13, 4
      %s23 = sphi 0, %s25
      %s26 = sphi 0, %s23
      %s27 = sphi 0, %s26
      %s43 = sphi 0, %s27
      %s47 = sphi 0, %s47
      %s49 = sphi 0, %s47
      %s50 = sphi 0, %s49
      %s64 = sphi 0, %s50
      %s68 = sphi 0, %s68
      %s70 = sphi 0, %s68
      %s71 = sphi 0, %s70
      %s85 = sphi 0, %s71
      %s91 = sphi 0, %s93
      %s94 = sphi 0, %s91
      %s95 = sphi 0, %s94
      %s111 = sphi 0, %s95
    $region4: #{tpu_custom_call.1} parent=1 // loop_header_branch
      %16 = sbr.rel (%p14) target = $region8
    $region5: #{tpu_custom_call.1} parent=1 // loop_body
      %s18 = ssub.s32 %s13, 1
      %s19 = ssub.s32 %s13, 2
      %s20 = sadd.s32 %s13, 1
      %s21 = ssub.s32 %s13, %s20
      %p22 = scmp.eq.s32.totalorder %s21, 0
      %s24 = sadd.s32 %s23, 1
      %s25 = scalar_select %p22, %s23, %s24
      %p28 = pneg %p22
      %p29 = scmp.eq.s32.totalorder %s13, 1
      %p30 = por %p28, %p29
      %p31 = scmp.ne.s32.totalorder %s23, %s26
      %p32 = scmp.eq.s32.totalorder %s13, 0
      %p33 = por %p31, %p32
      %p34 = scmp.ne.s32.totalorder %s23, %s26
      %p35 = scmp.eq.s32.totalorder %s18, 1
      %p36 = por %p34, %p35
      %p37 = scmp.ne.s32.totalorder %s26, %s27
      %p38 = scmp.eq.s32.totalorder %s18, 0
      %p39 = por %p37, %p38
      %p40 = scmp.ne.s32.totalorder %s26, %s27
      %p41 = scmp.eq.s32.totalorder %s19, 1
      %p42 = por %p40, %p41
      %p44 = scmp.ne.s32.totalorder %s27, %s43
      %p45 = scmp.eq.s32.totalorder %s19, 0
      %p46 = por %p44, %p45
      %s48 = sadd.s32 %s47, 1
      %p51 = scmp.eq.s32.totalorder %s13, 1
      %p52 = scmp.ne.s32.totalorder %s47, %s49
      %p53 = scmp.eq.s32.totalorder %s13, 0
      %p54 = por %p52, %p53
      %p55 = scmp.ne.s32.totalorder %s47, %s49
      %p56 = scmp.eq.s32.totalorder %s18, 1
      %p57 = por %p55, %p56
      %p58 = scmp.ne.s32.totalorder %s49, %s50
      %p59 = scmp.eq.s32.totalorder %s18, 0
      %p60 = por %p58, %p59
      %p61 = scmp.ne.s32.totalorder %s49, %s50
      %p62 = scmp.eq.s32.totalorder %s19, 1
      %p63 = por %p61, %p62
      %p65 = scmp.ne.s32.totalorder %s50, %s64
      %p66 = scmp.eq.s32.totalorder %s19, 0
      %p67 = por %p65, %p66
      %s69 = sadd.s32 %s68, 1
      %p72 = scmp.eq.s32.totalorder %s13, 1
      %p73 = scmp.ne.s32.totalorder %s68, %s70
      %p74 = scmp.eq.s32.totalorder %s13, 0
      %p75 = por %p73, %p74
      %p76 = scmp.ne.s32.totalorder %s68, %s70
      %p77 = scmp.eq.s32.totalorder %s18, 1
      %p78 = por %p76, %p77
      %p79 = scmp.ne.s32.totalorder %s70, %s71
      %p80 = scmp.eq.s32.totalorder %s18, 0
      %p81 = por %p79, %p80
      %p82 = scmp.ne.s32.totalorder %s70, %s71
      %p83 = scmp.eq.s32.totalorder %s19, 1
      %p84 = por %p82, %p83
      %p86 = scmp.ne.s32.totalorder %s71, %s85
      %p87 = scmp.eq.s32.totalorder %s19, 0
      %p88 = por %p86, %p87
      %s89 = ssub.s32 %s13, %s20
      %p90 = scmp.eq.s32.totalorder %s89, 0
      %s92 = sadd.s32 %s91, 1
      %s93 = scalar_select %p90, %s91, %s92
      %p96 = pneg %p90
      %p97 = scmp.eq.s32.totalorder %s13, 1
      %p98 = por %p96, %p97
      %p99 = scmp.ne.s32.totalorder %s91, %s94
      %p100 = scmp.eq.s32.totalorder %s13, 0
      %p101 = por %p99, %p100
      %p102 = scmp.ne.s32.totalorder %s91, %s94
      %p103 = scmp.eq.s32.totalorder %s18, 1
      %p104 = por %p102, %p103
      %p105 = scmp.ne.s32.totalorder %s94, %s95
      %p106 = scmp.eq.s32.totalorder %s18, 0
      %p107 = por %p105, %p106
      %p108 = scmp.ne.s32.totalorder %s94, %s95
      %p109 = scmp.eq.s32.totalorder %s19, 1
      %p110 = por %p108, %p109
      %p112 = scmp.ne.s32.totalorder %s95, %s111
      %p113 = scmp.eq.s32.totalorder %s19, 0
      %p114 = por %p112, %p113
      %p115 = scmp.le.s32.totalorder 1, %s13
      %p116 = scmp.lt.s32.totalorder %s13, 3
      %p117 = pnand %p115, %p116
      %p118 = pneg %p117
      // Predicated region
      $region9: #{tpu_custom_call.1} parent=5 // pred_check
        _
      $region10: #{tpu_custom_call.1} parent=5 // pred_check_branch
        %120 = sbr.rel (%p117) target = $region12
      $region11: #{tpu_custom_call.1} parent=5 // pred_region
        %s121 = ssub.s32 %s13, 1
        // Predicated region
        $region13: #{tpu_custom_call.1} parent=11 // pred_check
          %p122 = pneg %p60
        $region14: #{tpu_custom_call.1} parent=11 // pred_check_branch
          %124 = sbr.rel (%p122) target = $region16
        $region15: #{tpu_custom_call.1} parent=11 // pred_region
          %s126 = ssub.s32 512, 512
          %127 = vsyncadd [#allocation3], %s126
          %s128 = sshll.u32 [#allocation2], 4
          %s129 = int_to_ptr.vmem [resolvable:$true] %s128
          %134 = dma.hbm_to_vmem [thread:$0]  %s1, 512, %s129, [#allocation3], 128, 128, 8
        $region16: #{tpu_custom_call.1} parent=11 // pred_fallthru
          _
        // Predicated region
        $region17: #{tpu_custom_call.1} parent=11 // pred_check
          %p135 = pneg %p81
        $region18: #{tpu_custom_call.1} parent=11 // pred_check_branch
          %137 = sbr.rel (%p135) target = $region20
        $region19: #{tpu_custom_call.1} parent=11 // pred_region
          _
        $region20: #{tpu_custom_call.1} parent=11 // pred_fallthru
          _
      $region12: #{tpu_custom_call.1} parent=5 // pred_fallthru
        _
      %p138 = scmp.lt.s32.totalorder %s13, 2
      // Predicated region
      $region21: #{tpu_custom_call.1} parent=5 // pred_check
        %p139 = pneg %p138
      $region22: #{tpu_custom_call.1} parent=5 // pred_check_branch
        %141 = sbr.rel (%p139) target = $region24
      $region23: #{tpu_custom_call.1} parent=5 // pred_region
        // Predicated region
        $region25: #{tpu_custom_call.1} parent=23 // pred_check
          %p142 = pneg %p33
        $region26: #{tpu_custom_call.1} parent=23 // pred_check_branch
          %144 = sbr.rel (%p142) target = $region28
        $region27: #{tpu_custom_call.1} parent=23 // pred_region
          %p145 = scmp.lt.s32.totalorder %s13, 1
          %s146 = scalar_select %p145, %s13, 1
          %s147 = smul.addr %s146, 8
          %s148 = scalar_lea.vmem %s0, %s147
        $region28: #{tpu_custom_call.1} parent=23 // pred_fallthru
          _
      $region24: #{tpu_custom_call.1} parent=5 // pred_fallthru
        _
      %p149 = scmp.le.s32.totalorder 1, %s13
      %p150 = scmp.lt.s32.totalorder %s13, 3
      %p151 = pnand %p149, %p150
      %p152 = pneg %p151
      // Predicated region
      $region29: #{tpu_custom_call.1} parent=5 // pred_check
        _
      $region30: #{tpu_custom_call.1} parent=5 // pred_check_branch
        %154 = sbr.rel (%p151) target = $region32
      $region31: #{tpu_custom_call.1} parent=5 // pred_region
        %s155 = ssub.s32 %s13, 1
        // Predicated region
        $region33: #{tpu_custom_call.1} parent=31 // pred_check
          %p156 = pneg %p60
        $region34: #{tpu_custom_call.1} parent=31 // pred_check_branch
          %158 = sbr.rel (%p156) target = $region36
        $region35: #{tpu_custom_call.1} parent=31 // pred_region
          %159 = dma.done [#allocation3], 512
        $region36: #{tpu_custom_call.1} parent=31 // pred_fallthru
          _
        %p160 = scmp.lt.s32.totalorder %s18, 1
        %s161 = scalar_select %p160, %s18, 1
        %s162 = smul.addr %s161, 8
        %s163 = scalar_lea.vmem %s0, %s162
        %p164 = pneg %p39
        %p165 = pneg %p36
        %p166 = pneg %p60
        %p167 = pneg %p57
        %p168 = pneg %p81
        %p169 = pneg %p78
        %p170 = pneg %p107
        %p171 = pneg %p104
        %s172 = sand.u32 %s94, 1
        %s173 = scalar_lea.sflag [#allocation4], %s172
        %s174 = sand.u32 %s94, 1
        %s175 = smul.addr %s174, 8
        %s176 = scalar_lea.vmem [#allocation5], %s175
        %p177 = scmp.lt.s32.totalorder %s18, 1
        %s178 = scalar_select %p177, %s18, 1
        %s179 = smul.addr %s178, 8
        %s180 = scalar_lea.vmem %s0, %s179
        %v181 = vld [vmem:[%s180] sm:$0xff]
        %vm182 = vcmp.gt.s32.totalorder %v181, 0
        %v183 = vsel %vm182, %v181, 0
        %vm184 = vcmp.lt.s32.totalorder %v183, 31
        %v185 = vsel %vm184, %v183, 31
        %v186 = vlaneseq
        %v187 = vand.u32 %v186, 127
        %188 = vset.pattern.permute.xlu0 0
        %189 = vperm.xlu0 %188, %v185
        %v190 = vpop.permute.xlu0 %189
        %vm191 = vcmp.eq.s32.totalorder %v190, %v187
        %v192 = vsel %vm191, 1, 0
        %v193 = vcvt.s32.f32 %v192
        %v194 = vld [vmem:[#allocation2] sm:$0xff]
        %v195 = vld [vmem:[#allocation2 + $0x8] sm:$0xff]
        %v196 = vld [vmem:[#allocation2 + $0x10] sm:$0xff]
        %v197 = vld [vmem:[#allocation2 + $0x18] sm:$0xff]
        %vm198 = vcmask 261120
        %v200 = vsel %vm198, %v193, 0
        %202 = vmatprep.subr.mxu0 0.0
        %203 = vmatpush1.msra.mxu0 %v194
        %204 = vmatprep.subr.mxu0 0.0
        %205 = vmatpush1.msra.mxu0 %v195
        %206 = vmatprep.subr.mxu0 0.0
        %207 = vmatpush1.msra.mxu0 %v196
        %208 = vmatprep.subr.mxu0 0.0
        %209 = vmatpush1.msra.mxu0 %v197
        %210 = vmatprep.subr.mxu0 0.0
        %211 = vmatpush1.msra.mxu0 0.0
        %212 = vmatprep.subr.mxu0 0.0
        %213 = vmatpush1.msra.mxu0 0.0
        %214 = vmatprep.subr.mxu0 0.0
        %215 = vmatpush1.msra.mxu0 0.0
        %216 = vmatprep.subr.mxu0 0.0
        %217 = vmatpush1.msra.mxu0 0.0
        %218 = vmatprep.subr.mxu0 0.0
        %219 = vmatpush1.msra.mxu0 0.0
        %220 = vmatprep.subr.mxu0 0.0
        %221 = vmatpush1.msra.mxu0 0.0
        %222 = vmatprep.subr.mxu0 0.0
        %223 = vmatpush1.msra.mxu0 0.0
        %224 = vmatprep.subr.mxu0 0.0
        %225 = vmatpush1.msra.mxu0 0.0
        %226 = vmatprep.subr.mxu0 0.0
        %227 = vmatpush1.msra.mxu0 0.0
        %228 = vmatprep.subr.mxu0 0.0
        %229 = vmatpush1.msra.mxu0 0.0
        %230 = vmatprep.subr.mxu0 0.0
        %231 = vmatpush1.msra.mxu0 0.0
        %232 = vmatprep.subr.mxu0 0.0
        %233 = vmatpush1.msra.mxu0 0.0
        %234 = vmatprep.subr.mxu0 0.0
        %235 = vmatpush1.msra.mxu0 0.0
        %236 = vmatprep.subr.mxu0 0.0
        %237 = vmatpush1.msra.mxu0 0.0
        %238 = vmatprep.subr.mxu0 0.0
        %239 = vmatpush1.msra.mxu0 0.0
        %240 = vmatprep.subr.mxu0 0.0
        %241 = vmatpush1.msra.mxu0 0.0
        %242 = vmatprep.subr.mxu0 0.0
        %243 = vmatpush1.msra.mxu0 0.0
        %244 = vmatprep.subr.mxu0 0.0
        %245 = vmatpush1.msra.mxu0 0.0
        %246 = vmatprep.subr.mxu0 0.0
        %247 = vmatpush1.msra.mxu0 0.0
        %248 = vmatprep.subr.mxu0 0.0
        %249 = vmatpush1.msra.mxu0 0.0
        %250 = vmatprep.subr.mxu0 0.0
        %251 = vmatpush1.msra.mxu0 0.0
        %252 = vmatprep.subr.mxu0 0.0
        %253 = vmatpush1.msra.mxu0 0.0
        %254 = vmatprep.subr.mxu0 0.0
        %255 = vmatpush1.msra.mxu0 0.0
        %256 = vmatprep.subr.mxu0 0.0
        %257 = vmatpush1.msra.mxu0 0.0
        %258 = vmatprep.subr.mxu0 0.0
        %259 = vmatpush1.msra.mxu0 0.0
        %260 = vmatprep.subr.mxu0 0.0
        %261 = vmatpush1.msra.mxu0 0.0
        %262 = vmatprep.subr.mxu0 0.0
        %263 = vmatpush1.msra.mxu0 0.0
        %264 = vmatprep.subr.mxu0 0.0
        %265 = vmatpush1.msra.mxu0 0.0
        %266 = vmatprep.mubr.f32.mxu0 0.0
        %267 = vmatmul.mubr.f32.gmra.mrb[0].mxu0 %v200
        %v268 = vpop.f32.mrb[0].mxu0
        %v269 = vadd.f32 0.0, %v268
        %v270 = vpop.f32.mrb[0].mxu0
        %271 = vdwg.mxu0
        %v272 = vld [vmem:[%s2] sm:$0xff]
        %v273 = vadd.f32 %v269, %v272
        %274 = vst [vmem:[%s176] sm:$0xff] %v273
        %s275 = sand.u32 %s94, 1
        %s276 = scalar_lea.sflag [#allocation4], %s275
        %s277 = sand.u32 %s94, 1
        %s278 = smul.addr %s277, 8
        %s279 = scalar_lea.vmem [#allocation5], %s278
        // Predicated region
        $region37: #{tpu_custom_call.1} parent=31 // pred_check
          %p280 = pneg %p104
        $region38: #{tpu_custom_call.1} parent=31 // pred_check_branch
          %282 = sbr.rel (%p280) target = $region40
        $region39: #{tpu_custom_call.1} parent=31 // pred_region
          %s284 = ssub.s32 128, 128
          %285 = vsyncadd %s276, %s284
          %s286 = smul.addr %s18, 128
          %s287 = scalar_lea.hbm %s3, %s286
          %s289 = sshll.u32 %s279, 4
          %s290 = int_to_ptr.vmem [resolvable:$true] %s289
          %292 = dma.vmem_to_hbm [thread:$0]  %s290, 128, %s287, %s276
        $region40: #{tpu_custom_call.1} parent=31 // pred_fallthru
          _
      $region32: #{tpu_custom_call.1} parent=5 // pred_fallthru
        _
      %p293 = scmp.le.s32.totalorder 2, %s13
      // Predicated region
      $region41: #{tpu_custom_call.1} parent=5 // pred_check
        %p294 = pneg %p293
      $region42: #{tpu_custom_call.1} parent=5 // pred_check_branch
        %296 = sbr.rel (%p294) target = $region44
      $region43: #{tpu_custom_call.1} parent=5 // pred_region
        %s297 = ssub.s32 %s13, 2
        // Predicated region
        $region45: #{tpu_custom_call.1} parent=43 // pred_check
          %p298 = pneg %p110
        $region46: #{tpu_custom_call.1} parent=43 // pred_check_branch
          %300 = sbr.rel (%p298) target = $region48
        $region47: #{tpu_custom_call.1} parent=43 // pred_region
          %s301 = sand.u32 %s95, 1
          %s302 = scalar_lea.sflag [#allocation4], %s301
          %s303 = sand.u32 %s95, 1
          %s304 = smul.addr %s303, 8
          %s305 = scalar_lea.vmem [#allocation5], %s304
          %306 = dma.done %s302, 128
        $region48: #{tpu_custom_call.1} parent=43 // pred_fallthru
          _
      $region44: #{tpu_custom_call.1} parent=5 // pred_fallthru
        _
    $region6: #{tpu_custom_call.1} parent=1 // loop_footer
      %s17 = sadd.s32 1, %s13
    $region7: #{tpu_custom_call.1} parent=1 // loop_footer_branch
      %12 = sbr.rel target = $region3
    $region8: #{tpu_custom_call.1} parent=1 // loop_exit
      _
    %307 = vsyncpa [#allocation3], 1
    %s308 = scalar_lea.sflag [#allocation3], 1
    %309 = vsyncpa %s308, 1
    %310 = vsyncpa [#allocation4], 1
    %s311 = scalar_lea.sflag [#allocation4], 1
    %312 = vsyncpa %s311, 1

</llo_original>
